<compile_context>
chip_gen: v5e
topology: v5e:2x2
jax: 0.10.0
libtpu: 0.0.40
codegen_flags: <defaults>
</compile_context>

<pallas_src>
import functools

import jax
import jax.numpy as jnp
from jax import lax
from jax.experimental import pallas as pl
from jax.experimental.pallas import tpu as pltpu


def _round_up(n, m):
    return ((n + m - 1) // m) * m


# ---------------------------------------------------------------------------
# Kernels
# ---------------------------------------------------------------------------

def _fold_affine(s1, s2, g, b, inv_n, eps):
    """Fold GroupNorm(1,C) stats + affine into per-channel scale/shift."""
    mean = s1 * inv_n
    var = jnp.maximum(s2 * inv_n - mean * mean, 0.0)
    inv_std = lax.rsqrt(var + eps)
    scale = g * inv_std          # (C, 1)
    shift = b - mean * scale     # (C, 1)
    return scale, shift


def _groupnorm_act_kernel(x_ref, g_ref, b_ref, o_ref, *, eps, inv_n, apply_relu):
    # x_ref: (C, HWp) for one sample; g_ref / b_ref: (C, 1).
    x = x_ref[...].astype(jnp.float32)
    s1 = jnp.sum(x)
    s2 = jnp.sum(x * x)
    scale, shift = _fold_affine(
        s1, s2,
        g_ref[...].astype(jnp.float32),
        b_ref[...].astype(jnp.float32),
        inv_n, eps)
    y = x * scale + shift        # single FMA pass over the tile
    if apply_relu:
        y = jnp.maximum(y, 0.0)
    o_ref[...] = y.astype(o_ref.dtype)


def _conv_groupnorm_act_kernel(w_ref, p_ref, g_ref, b_ref, o_ref, *,
                               eps, inv_n, apply_relu):
    # w_ref: (Cout, K=9*Cin); p_ref: (K, HWp) im2col patches of one sample.
    y = jnp.dot(w_ref[...], p_ref[...], preferred_element_type=jnp.float32)
    s1 = jnp.sum(y)
    s2 = jnp.sum(y * y)
    scale, shift = _fold_affine(
        s1, s2,
        g_ref[...].astype(jnp.float32),
        b_ref[...].astype(jnp.float32),
        inv_n, eps)
    z = y * scale + shift
    if apply_relu:
        z = jnp.maximum(z, 0.0)
    o_ref[...] = z.astype(o_ref.dtype)


# ---------------------------------------------------------------------------
# Wrappers
# ---------------------------------------------------------------------------

def layernorm2d(x, gamma, beta, eps=1e-6, apply_relu=False):
    """GroupNorm(1, C) over (C, H, W) per sample, with optional fused ReLU.

    x: (B, C, H, W); gamma, beta: (C,).  Matches torch.nn.GroupNorm(1, C).
    """
    B, C, H, W = x.shape
    HW = H * W
    HWp = _round_up(HW, 128)
    itemsize = jnp.dtype(x.dtype).itemsize

    xf = x.reshape(B, C, HW)
    if HWp != HW:
        xf = jnp.pad(xf, ((0, 0), (0, 0), (0, HWp - HW)))
    g2 = gamma.reshape(C, 1)
    b2 = beta.reshape(C, 1)

    kernel = functools.partial(
        _groupnorm_act_kernel, eps=float(eps),
        inv_n=1.0 / float(C * HW), apply_relu=apply_relu)

    block_bytes = 2 * C * HWp * itemsize + 2 * C * 4
    vmem_limit = int(min(64 * 2**20, max(32 * 2**20, 4 * block_bytes)))

    out = pl.pallas_call(
        kernel,
        out_shape=jax.ShapeDtypeStruct((B, C, HWp), x.dtype),
        grid_spec=pltpu.PrefetchScalarGridSpec(
            num_scalar_prefetch=0,
            grid=(B,),
            in_specs=[
                pl.BlockSpec((pl.Squeezed(), C, HWp), lambda b: (b, 0, 0)),
                pl.BlockSpec((C, 1), lambda b: (0, 0)),
                pl.BlockSpec((C, 1), lambda b: (0, 0)),
            ],
            out_specs=pl.BlockSpec((pl.Squeezed(), C, HWp), lambda b: (b, 0, 0)),
        ),
        compiler_params=pltpu.CompilerParams(
            dimension_semantics=("parallel",),
            vmem_limit_bytes=vmem_limit,
        ),
        cost_estimate=pl.CostEstimate(
            flops=int(6 * B * C * HWp),
            transcendentals=int(B),
            bytes_accessed=int(2 * B * C * HWp * itemsize),
        ),
    )(xf, g2, b2)

    if HWp != HW:
        out = out[:, :, :HW]
    return out.reshape(B, C, H, W)


def _im2col_3x3(x):
    """Zero-padded 'same' 3x3 im2col: (B, Cin, H, W) -> (B, 9*Cin, H*W)."""
    B, Cin, H, W = x.shape
    xp = jnp.pad(x, ((0, 0), (0, 0), (1, 1), (1, 1)))
    cols = [xp[:, :, dy:dy + H, dx:dx + W].reshape(B, Cin, H * W)
            for dy in range(3) for dx in range(3)]
    return jnp.concatenate(cols, axis=1)


def conv3x3_groupnorm_relu(x, w, gamma, beta, eps=1e-6, apply_relu=True):
    """Fused Conv2d(k=3, pad=1, bias=False) -> GroupNorm(1, Cout) -> ReLU."""
    B, Cin, H, W = x.shape
    Cout = w.shape[0]
    HW = H * W
    HWp = _round_up(HW, 128)
    K = 9 * Cin
    itemsize = jnp.dtype(x.dtype).itemsize

    patches = _im2col_3x3(x)                                  # (B, K, HW)
    if HWp != HW:
        patches = jnp.pad(patches, ((0, 0), (0, 0), (0, HWp - HW)))
    # (Cout, Cin, 3, 3) -> (Cout, 3, 3, Cin) -> (Cout, K): matches patch rows.
    wmat = jnp.transpose(w, (0, 2, 3, 1)).reshape(Cout, K).astype(x.dtype)
    g2 = gamma.reshape(Cout, 1)
    b2 = beta.reshape(Cout, 1)

    kernel = functools.partial(
        _conv_groupnorm_act_kernel, eps=float(eps),
        inv_n=1.0 / float(Cout * HW), apply_relu=apply_relu)

    block_bytes = ((K + Cout) * HWp + Cout * K) * itemsize + 2 * Cout * 4
    vmem_limit = int(min(64 * 2**20, max(32 * 2**20, 4 * block_bytes)))

    out = pl.pallas_call(
        kernel,
        out_shape=jax.ShapeDtypeStruct((B, Cout, HWp), x.dtype),
        grid_spec=pltpu.PrefetchScalarGridSpec(
            num_scalar_prefetch=0,
            grid=(B,),
            in_specs=[
                pl.BlockSpec((Cout, K), lambda b: (0, 0)),
                pl.BlockSpec((pl.Squeezed(), K, HWp), lambda b: (b, 0, 0)),
                pl.BlockSpec((Cout, 1), lambda b: (0, 0)),
                pl.BlockSpec((Cout, 1), lambda b: (0, 0)),
            ],
            out_specs=pl.BlockSpec((pl.Squeezed(), Cout, HWp),
                                   lambda b: (b, 0, 0)),
        ),
        compiler_params=pltpu.CompilerParams(
            dimension_semantics=("parallel",),
            vmem_limit_bytes=vmem_limit,
        ),
        cost_estimate=pl.CostEstimate(
            flops=int(2 * B * Cout * K * HWp + 6 * B * Cout * HWp),
            transcendentals=int(B),
            bytes_accessed=int(B * (K + Cout) * HWp * itemsize
                               + Cout * K * itemsize),
        ),
    )(wmat, patches, g2, b2)

    if HWp != HW:
        out = out[:, :, :HW]
    return out.reshape(B, Cout, H, W)


def double_conv(x, w1, gamma1, beta1, w2, gamma2, beta2, eps=1e-6):
    """DoubleConv forward with batch_norm=False (LayerNorm2d) and ReLU."""
    h = conv3x3_groupnorm_relu(x, w1, gamma1, beta1, eps)
    return conv3x3_groupnorm_relu(h, w2, gamma2, beta2, eps)


# ---------------------------------------------------------------------------
# Pure-JAX references
# ---------------------------------------------------------------------------

def layernorm2d_ref(x, gamma, beta, eps=1e-6):
    B, C, H, W = x.shape
    xf = x.reshape(B, -1).astype(jnp.float32)
    mean = xf.mean(axis=1, keepdims=True)
    var = ((xf - mean) ** 2).mean(axis=1, keepdims=True)
    xn = ((xf - mean) / jnp.sqrt(var + eps)).reshape(B, C, H, W)
    return (xn * gamma.reshape(1, C, 1, 1)
            + beta.reshape(1, C, 1, 1)).astype(x.dtype)


def conv3x3_ref(x, w):
    return lax.conv_general_dilated(
        x, w, window_strides=(1, 1), padding=((1, 1), (1, 1)),
        dimension_numbers=("NCHW", "OIHW", "NCHW"))


def double_conv_ref(x, w1, g1, b1, w2, g2, b2, eps=1e-6):
    h = jnp.maximum(layernorm2d_ref(conv3x3_ref(x, w1), g1, b1, eps), 0.0)
    return jnp.maximum(layernorm2d_ref(conv3x3_ref(h, w2), g2, b2, eps), 0.0)


# ---------------------------------------------------------------------------

if __name__ == "__main__":
    key = jax.random.PRNGKey(0)
    k1, k2, k3 = jax.random.split(key, 3)

    B, C_in, C_mid, C_out, H, W = 2, 4, 4, 4, 16, 16
    x = jax.random.normal(k1, (B, C_in, H, W), dtype=jnp.float32)
    w1 = 0.2 * jax.random.normal(k2, (C_mid, C_in, 3, 3), dtype=jnp.float32)
    w2 = 0.2 * jax.random.normal(k3, (C_out, C_mid, 3, 3), dtype=jnp.float32)
    # nn.GroupNorm default affine init: weight=1, bias=0 (deterministic).
    g1 = jnp.ones((C_mid,), jnp.float32)
    b1 = jnp.zeros((C_mid,), jnp.float32)
    g2 = jnp.ones((C_out,), jnp.float32)
    b2 = jnp.zeros((C_out,), jnp.float32)

    # 1) standalone LayerNorm2d (GroupNorm(1, C)) kernel.
    ln = jax.block_until_ready(layernorm2d(x, g1, b1, eps=1e-6))
    ln_ref = layernorm2d_ref(x, g1, b1, eps=1e-6)
    assert jnp.allclose(ln, ln_ref, atol=1e-4, rtol=1e-4), "layernorm2d mismatch"

    # 2) full DoubleConv forward: (conv3x3 -> LN -> ReLU) * 2.
    out = jax.block_until_ready(double_conv(x, w1, g1, b1, w2, g2, b2, eps=1e-6))
    ref = double_conv_ref(x, w1, g1, b1, w2, g2, b2, eps=1e-6)
    assert jnp.allclose(out, ref, atol=1e-4, rtol=1e-4), "double_conv mismatch"

    print("KERNEL_OK")
</pallas_src>

<mosaic_0001>
module attributes {stable_mosaic.version = 11 : i64} {
  func.func @_groupnorm_act_kernel(%arg0: i32, %arg1: memref<1x4x256xf32, #tpu.memory_space<vmem>>, %arg2: memref<4x1xf32, #tpu.memory_space<vmem>>, %arg3: memref<4x1xf32, #tpu.memory_space<vmem>>, %arg4: memref<1x4x256xf32, #tpu.memory_space<vmem>>) attributes {dimension_semantics = [#tpu.dimension_semantics<parallel>], iteration_bounds = array<i64: 2>, scalar_prefetch = 0 : i64, scratch_operands = 0 : i64, tpu.core_type = #tpu.core_type<tc>, window_params = [{transform_indices = @transform_0, window_bounds = array<i64: 1, 4, 256>}, {pipeline_mode = #tpu.pipeline_mode<synchronous>, transform_indices = @transform_1, window_bounds = array<i64: 4, 1>}, {pipeline_mode = #tpu.pipeline_mode<synchronous>, transform_indices = @transform_2, window_bounds = array<i64: 4, 1>}, {transform_indices = @transform_3, window_bounds = array<i64: 1, 4, 256>}]} {
    %c0 = arith.constant 0 : index
    %c0_0 = arith.constant 0 : index
    %c0_1 = arith.constant 0 : index
    %0 = vector.load %arg1[%c0, %c0_0, %c0_1] : memref<1x4x256xf32, #tpu.memory_space<vmem>>, vector<1x4x256xf32>
    %1 = vector.shape_cast %0 : vector<1x4x256xf32> to vector<4x256xf32>
    %2 = vector.shape_cast %1 : vector<4x256xf32> to vector<1x4x256xf32>
    %cst = arith.constant dense<0.000000e+00> : vector<1xf32>
    %3 = vector.multi_reduction <add>, %2, %cst [1, 2] : vector<1x4x256xf32> to vector<1xf32>
    %4 = vector.shape_cast %3 : vector<1xf32> to vector<1x1x1xf32>
    %5 = vector.extract %4[0, 0, 0] : f32 from vector<1x1x1xf32>
    %6 = arith.mulf %1, %1 : vector<4x256xf32>
    %7 = vector.shape_cast %6 : vector<4x256xf32> to vector<1x4x256xf32>
    %cst_2 = arith.constant dense<0.000000e+00> : vector<1xf32>
    %8 = vector.multi_reduction <add>, %7, %cst_2 [1, 2] : vector<1x4x256xf32> to vector<1xf32>
    %9 = vector.shape_cast %8 : vector<1xf32> to vector<1x1x1xf32>
    %10 = vector.extract %9[0, 0, 0] : f32 from vector<1x1x1xf32>
    %c0_3 = arith.constant 0 : index
    %c0_4 = arith.constant 0 : index
    %11 = vector.load %arg2[%c0_3, %c0_4] : memref<4x1xf32, #tpu.memory_space<vmem>>, vector<4x1xf32>
    %c0_5 = arith.constant 0 : index
    %c0_6 = arith.constant 0 : index
    %12 = vector.load %arg3[%c0_5, %c0_6] : memref<4x1xf32, #tpu.memory_space<vmem>>, vector<4x1xf32>
    %cst_7 = arith.constant 9.765625E-4 : f32
    %13 = arith.mulf %5, %cst_7 : f32
    %cst_8 = arith.constant 9.765625E-4 : f32
    %14 = arith.mulf %10, %cst_8 : f32
    %15 = arith.mulf %13, %13 : f32
    %16 = arith.subf %14, %15 : f32
    %cst_9 = arith.constant 0.000000e+00 : f32
    %17 = arith.maximumf %16, %cst_9 : f32
    %cst_10 = arith.constant 9.99999997E-7 : f32
    %18 = arith.addf %17, %cst_10 : f32
    %19 = math.rsqrt %18 : f32
    %20 = vector.broadcast %19 : f32 to vector<4x1xf32>
    %21 = arith.mulf %11, %20 : vector<4x1xf32>
    %22 = vector.broadcast %13 : f32 to vector<4x1xf32>
    %23 = arith.mulf %22, %21 : vector<4x1xf32>
    %24 = arith.subf %12, %23 : vector<4x1xf32>
    %25 = vector.broadcast %21 : vector<4x1xf32> to vector<4x256xf32>
    %26 = arith.mulf %1, %25 : vector<4x256xf32>
    %27 = vector.broadcast %24 : vector<4x1xf32> to vector<4x256xf32>
    %28 = arith.addf %26, %27 : vector<4x256xf32>
    %c0_11 = arith.constant 0 : index
    %c0_12 = arith.constant 0 : index
    %c0_13 = arith.constant 0 : index
    %29 = vector.load %arg4[%c0_11, %c0_12, %c0_13] : memref<1x4x256xf32, #tpu.memory_space<vmem>>, vector<1x4x256xf32>
    %30 = vector.shape_cast %29 : vector<1x4x256xf32> to vector<4x256xf32>
    %31 = vector.shape_cast %28 : vector<4x256xf32> to vector<1x4x256xf32>
    tpu.vector_store %arg4[%c0_11, %c0_12, %c0_13], %31 {strides = array<i32>} : memref<1x4x256xf32, #tpu.memory_space<vmem>>, vector<1x4x256xf32>,
    return
  }
  func.func @transform_0(%arg0: i32) -> (i32, i32, i32) {
    %c0_i32 = arith.constant 0 : i32
    %c0_i32_0 = arith.constant 0 : i32
    %c0_i32_1 = arith.constant 0 : i32
    return %arg0, %c0_i32, %c0_i32_0 : i32, i32, i32
  }
  func.func @transform_1(%arg0: i32) -> (i32, i32) {
    %c0_i32 = arith.constant 0 : i32
    %c0_i32_0 = arith.constant 0 : i32
    %c0_i32_1 = arith.constant 0 : i32
    return %c0_i32, %c0_i32_0 : i32, i32
  }
  func.func @transform_2(%arg0: i32) -> (i32, i32) {
    %c0_i32 = arith.constant 0 : i32
    %c0_i32_0 = arith.constant 0 : i32
    %c0_i32_1 = arith.constant 0 : i32
    return %c0_i32, %c0_i32_0 : i32, i32
  }
  func.func @transform_3(%arg0: i32) -> (i32, i32, i32) {
    %c0_i32 = arith.constant 0 : i32
    %c0_i32_0 = arith.constant 0 : i32
    %c0_i32_1 = arith.constant 0 : i32
    return %arg0, %c0_i32, %c0_i32_0 : i32, i32, i32
  }
}

</mosaic_0001>

<llo_original>
// kernel: tpu_custom_call.1
$region0: #{tpu_custom_call.1}
  #allocation0 [shape = 'u32[]', space=smem, size = 0x4, offset = 0x4, fixed_abs, tag = 'smem constant byte address 0x4 - core index']
  #allocation1 [shape = 'u32[72,128]{1,0:T(1,128)}', space=vmem, size = 0x9000, scoped, tag = 'internal scratch']
  %s0 = inlined_call_operand.hbm [shape: f32[2,4,256], index: 0, kind: input, shape index: {}]
  %s1 = inlined_call_operand.vmem [shape: f32[4,1], index: 1, kind: input, shape index: {}]
  %s2 = inlined_call_operand.vmem [shape: f32[4,1], index: 2, kind: input, shape index: {}]
  %s3 = inlined_call_operand.hbm [shape: f32[2,4,256], index: 3, kind: output, shape index: {}]
  %s4 = sld [smem:[#allocation0]]
  $region49: #{tpu_custom_call.1} parent=0
    _
  %s6 = ssub.s32 1, %s4
  %s7 = scalar_select 0, %s6, %s4
  $region1: #{tpu_custom_call.1} parent=0
    #allocation2 [shape = 'u8[8192]{0}', space=vmem, size = 0x2000, scoped, tag = 'input window, operand 0']
    #allocation3 [shape = 's32[2]{0}', space=sflag, size = 0x8, scoped, tag = 'scoped memory for tpu_custom_call.1']
    #allocation4 [shape = 's32[2]{0}', space=sflag, size = 0x8, scoped, tag = 'scoped memory for tpu_custom_call.1']
    #allocation5 [shape = 'u8[8192]{0}', space=vmem, size = 0x2000, scoped, tag = 'output window, operand 0']
    %8 = vsyncpa [#allocation3], 0
    %s9 = scalar_lea.sflag [#allocation3], 1
    %10 = vsyncpa %s9, 0
    %11 = vsyncpa [#allocation4], 0
    %s12 = scalar_lea.sflag [#allocation4], 1
    %13 = vsyncpa %s12, 0
    loop: start=0, step=1, limit=4
    $region2: #{tpu_custom_call.1} parent=1 // loop_pre_header
      _
    $region3: #{tpu_custom_call.1} parent=1 // loop_header
      %s15 = sphi 0, %s19
      %p16 = scmp.ge.s32.totalorder %s15, 4
      %s25 = sphi 0, %s27
      %s28 = sphi 0, %s25
      %s29 = sphi 0, %s28
      %s45 = sphi 0, %s29
      %s49 = sphi 0, %s49
      %s51 = sphi 0, %s49
      %s52 = sphi 0, %s51
      %s66 = sphi 0, %s52
      %s70 = sphi 0, %s70
      %s72 = sphi 0, %s70
      %s73 = sphi 0, %s72
      %s87 = sphi 0, %s73
      %s93 = sphi 0, %s95
      %s96 = sphi 0, %s93
      %s97 = sphi 0, %s96
      %s113 = sphi 0, %s97
    $region4: #{tpu_custom_call.1} parent=1 // loop_header_branch
      %18 = sbr.rel (%p16) target = $region8
    $region5: #{tpu_custom_call.1} parent=1 // loop_body
      %s20 = ssub.s32 %s15, 1
      %s21 = ssub.s32 %s15, 2
      %s22 = sadd.s32 %s15, 1
      %s23 = ssub.s32 %s15, %s22
      %p24 = scmp.eq.s32.totalorder %s23, 0
      %s26 = sadd.s32 %s25, 1
      %s27 = scalar_select %p24, %s25, %s26
      %p30 = pneg %p24
      %p31 = scmp.eq.s32.totalorder %s15, 1
      %p32 = por %p30, %p31
      %p33 = scmp.ne.s32.totalorder %s25, %s28
      %p34 = scmp.eq.s32.totalorder %s15, 0
      %p35 = por %p33, %p34
      %p36 = scmp.ne.s32.totalorder %s25, %s28
      %p37 = scmp.eq.s32.totalorder %s20, 1
      %p38 = por %p36, %p37
      %p39 = scmp.ne.s32.totalorder %s28, %s29
      %p40 = scmp.eq.s32.totalorder %s20, 0
      %p41 = por %p39, %p40
      %p42 = scmp.ne.s32.totalorder %s28, %s29
      %p43 = scmp.eq.s32.totalorder %s21, 1
      %p44 = por %p42, %p43
      %p46 = scmp.ne.s32.totalorder %s29, %s45
      %p47 = scmp.eq.s32.totalorder %s21, 0
      %p48 = por %p46, %p47
      %s50 = sadd.s32 %s49, 1
      %p53 = scmp.eq.s32.totalorder %s15, 1
      %p54 = scmp.ne.s32.totalorder %s49, %s51
      %p55 = scmp.eq.s32.totalorder %s15, 0
      %p56 = por %p54, %p55
      %p57 = scmp.ne.s32.totalorder %s49, %s51
      %p58 = scmp.eq.s32.totalorder %s20, 1
      %p59 = por %p57, %p58
      %p60 = scmp.ne.s32.totalorder %s51, %s52
      %p61 = scmp.eq.s32.totalorder %s20, 0
      %p62 = por %p60, %p61
      %p63 = scmp.ne.s32.totalorder %s51, %s52
      %p64 = scmp.eq.s32.totalorder %s21, 1
      %p65 = por %p63, %p64
      %p67 = scmp.ne.s32.totalorder %s52, %s66
      %p68 = scmp.eq.s32.totalorder %s21, 0
      %p69 = por %p67, %p68
      %s71 = sadd.s32 %s70, 1
      %p74 = scmp.eq.s32.totalorder %s15, 1
      %p75 = scmp.ne.s32.totalorder %s70, %s72
      %p76 = scmp.eq.s32.totalorder %s15, 0
      %p77 = por %p75, %p76
      %p78 = scmp.ne.s32.totalorder %s70, %s72
      %p79 = scmp.eq.s32.totalorder %s20, 1
      %p80 = por %p78, %p79
      %p81 = scmp.ne.s32.totalorder %s72, %s73
      %p82 = scmp.eq.s32.totalorder %s20, 0
      %p83 = por %p81, %p82
      %p84 = scmp.ne.s32.totalorder %s72, %s73
      %p85 = scmp.eq.s32.totalorder %s21, 1
      %p86 = por %p84, %p85
      %p88 = scmp.ne.s32.totalorder %s73, %s87
      %p89 = scmp.eq.s32.totalorder %s21, 0
      %p90 = por %p88, %p89
      %s91 = ssub.s32 %s15, %s22
      %p92 = scmp.eq.s32.totalorder %s91, 0
      %s94 = sadd.s32 %s93, 1
      %s95 = scalar_select %p92, %s93, %s94
      %p98 = pneg %p92
      %p99 = scmp.eq.s32.totalorder %s15, 1
      %p100 = por %p98, %p99
      %p101 = scmp.ne.s32.totalorder %s93, %s96
      %p102 = scmp.eq.s32.totalorder %s15, 0
      %p103 = por %p101, %p102
      %p104 = scmp.ne.s32.totalorder %s93, %s96
      %p105 = scmp.eq.s32.totalorder %s20, 1
      %p106 = por %p104, %p105
      %p107 = scmp.ne.s32.totalorder %s96, %s97
      %p108 = scmp.eq.s32.totalorder %s20, 0
      %p109 = por %p107, %p108
      %p110 = scmp.ne.s32.totalorder %s96, %s97
      %p111 = scmp.eq.s32.totalorder %s21, 1
      %p112 = por %p110, %p111
      %p114 = scmp.ne.s32.totalorder %s97, %s113
      %p115 = scmp.eq.s32.totalorder %s21, 0
      %p116 = por %p114, %p115
      %p117 = scmp.le.s32.totalorder 1, %s15
      %p118 = scmp.lt.s32.totalorder %s15, 3
      %p119 = pnand %p117, %p118
      %p120 = pneg %p119
      // Predicated region
      $region9: #{tpu_custom_call.1} parent=5 // pred_check
        _
      $region10: #{tpu_custom_call.1} parent=5 // pred_check_branch
        %122 = sbr.rel (%p119) target = $region12
      $region11: #{tpu_custom_call.1} parent=5 // pred_region
        %s123 = ssub.s32 %s15, 1
        // Predicated region
        $region13: #{tpu_custom_call.1} parent=11 // pred_check
          %p124 = pneg %p62
        $region14: #{tpu_custom_call.1} parent=11 // pred_check_branch
          %126 = sbr.rel (%p124) target = $region16
        $region15: #{tpu_custom_call.1} parent=11 // pred_region
          _
        $region16: #{tpu_custom_call.1} parent=11 // pred_fallthru
          _
        // Predicated region
        $region17: #{tpu_custom_call.1} parent=11 // pred_check
          %p127 = pneg %p83
        $region18: #{tpu_custom_call.1} parent=11 // pred_check_branch
          %129 = sbr.rel (%p127) target = $region20
        $region19: #{tpu_custom_call.1} parent=11 // pred_region
          _
        $region20: #{tpu_custom_call.1} parent=11 // pred_fallthru
          _
      $region12: #{tpu_custom_call.1} parent=5 // pred_fallthru
        _
      %p130 = scmp.lt.s32.totalorder %s15, 2
      // Predicated region
      $region21: #{tpu_custom_call.1} parent=5 // pred_check
        %p131 = pneg %p130
      $region22: #{tpu_custom_call.1} parent=5 // pred_check_branch
        %133 = sbr.rel (%p131) target = $region24
      $region23: #{tpu_custom_call.1} parent=5 // pred_region
        // Predicated region
        $region25: #{tpu_custom_call.1} parent=23 // pred_check
          %p134 = pneg %p35
        $region26: #{tpu_custom_call.1} parent=23 // pred_check_branch
          %136 = sbr.rel (%p134) target = $region28
        $region27: #{tpu_custom_call.1} parent=23 // pred_region
          %s137 = sand.u32 %s25, 1
          %s138 = scalar_lea.sflag [#allocation3], %s137
          %s139 = sand.u32 %s25, 1
          %s140 = smul.addr %s139, 8
          %s141 = scalar_lea.vmem [#allocation2], %s140
          %143 = vsyncadd %s138, 0
          %s144 = smul.addr %s15, 2
          %s145 = smul.addr %s144, 4
          %s146 = scalar_lea.hbm %s0, %s145
          %s148 = sshll.u32 %s146, 4
          %s149 = int_to_ptr.hbm [resolvable:$true] %s148
          %s150 = sshll.u32 %s141, 4
          %s151 = int_to_ptr.vmem [resolvable:$true] %s150
          %153 = dma.hbm_to_vmem [thread:$0]  %s149, 128, %s151, %s138
        $region28: #{tpu_custom_call.1} parent=23 // pred_fallthru
          _
      $region24: #{tpu_custom_call.1} parent=5 // pred_fallthru
        _
      %p154 = scmp.le.s32.totalorder 1, %s15
      %p155 = scmp.lt.s32.totalorder %s15, 3
      %p156 = pnand %p154, %p155
      %p157 = pneg %p156
      // Predicated region
      $region29: #{tpu_custom_call.1} parent=5 // pred_check
        _
      $region30: #{tpu_custom_call.1} parent=5 // pred_check_branch
        %159 = sbr.rel (%p156) target = $region32
      $region31: #{tpu_custom_call.1} parent=5 // pred_region
        %s160 = ssub.s32 %s15, 1
        %s161 = sand.u32 %s28, 1
        %s162 = scalar_lea.sflag [#allocation3], %s161
        %s163 = sand.u32 %s28, 1
        %s164 = smul.addr %s163, 8
        %s165 = scalar_lea.vmem [#allocation2], %s164
        // Predicated region
        $region33: #{tpu_custom_call.1} parent=31 // pred_check
          %p166 = pneg %p41
        $region34: #{tpu_custom_call.1} parent=31 // pred_check_branch
          %168 = sbr.rel (%p166) target = $region36
        $region35: #{tpu_custom_call.1} parent=31 // pred_region
          %170 = dma.done %s162, 128
        $region36: #{tpu_custom_call.1} parent=31 // pred_fallthru
          _
        %s171 = sand.u32 %s28, 1
        %s172 = scalar_lea.sflag [#allocation3], %s171
        %s173 = sand.u32 %s28, 1
        %s174 = smul.addr %s173, 8
        %s175 = scalar_lea.vmem [#allocation2], %s174
        %p176 = pneg %p41
        %p177 = pneg %p38
        %p178 = pneg %p62
        %p179 = pneg %p59
        %p180 = pneg %p83
        %p181 = pneg %p80
        %p182 = pneg %p109
        %p183 = pneg %p106
        %s184 = sand.u32 %s96, 1
        %s185 = scalar_lea.sflag [#allocation4], %s184
        %s186 = sand.u32 %s96, 1
        %s187 = smul.addr %s186, 8
        %s188 = scalar_lea.vmem [#allocation5], %s187
        %v189 = vld [vmem:[%s165] sm:$0xff]
        %191 = vst [vmem:[#allocation1] ss:$2 sm:$0xff] %v189
        %v192 = vld.sshfl [vmem:[#allocation1] sm:$0xff pattern:$0x75316420]
        %v193 = vld.sshfl [vmem:[#allocation1 + $0x8] sm:$0xff pattern:$0x75316420]
        %vm196 = vcmask 1043456
        %v197 = vsel %vm196, %v192, 0.0
        %v198 = vsel %vm196, %v193, 0.0
        %v199 = vadd.f32 %v197, %v198
        %200 = vadd.xlane.f32.xlu0 %v199
        %v201 = vpop.xlane.xlu0 %200
        %v202 = vrot.slane %v201, 4
        %v203 = vadd.f32 %v201, %v202
        %v204 = vrot.slane %v203, 2
        %v205 = vadd.f32 %v203, %v204
        %v206 = vrot.slane %v205, 1
        %v207 = vadd.f32 %v205, %v206
        %s208 = vtos %v207
        %v209 = vmul.f32 %v189, %v189
        %211 = vst [vmem:[#allocation1] ss:$2 sm:$0xff] %v209
        %v212 = vld.sshfl [vmem:[#allocation1] sm:$0xff pattern:$0x75316420]
        %v213 = vld.sshfl [vmem:[#allocation1 + $0x8] sm:$0xff pattern:$0x75316420]
        %v216 = vsel %vm196, %v212, 0.0
        %v217 = vsel %vm196, %v213, 0.0
        %v218 = vadd.f32 %v216, %v217
        %219 = vadd.xlane.f32.xlu0 %v218
        %v220 = vpop.xlane.xlu0 %219
        %v221 = vrot.slane %v220, 4
        %v222 = vadd.f32 %v220, %v221
        %v223 = vrot.slane %v222, 2
        %v224 = vadd.f32 %v222, %v223
        %v225 = vrot.slane %v224, 1
        %v226 = vadd.f32 %v224, %v225
        %s227 = vtos %v226
        %v228 = vld [vmem:[%s1] sm:$0xf]
        %v229 = vld [vmem:[%s2] sm:$0xf]
        %s230 = smul.f32 %s208, 0.0009765625
        %s231 = smul.f32 %s227, 0.0009765625
        %s232 = smul.f32 %s230, %s230
        %s233 = ssub.f32 %s231, %s232
        %s234 = smax.f32 %s233, 0.0
        %s235 = sadd.f32 %s234, 1e-06
        %v236 = vstv %s235
        %v237 = vrsqrt.pop %v236
        %v238 = vmul.f32 %v237, %v236
        %v239 = vmul.f32 %v238, %v237
        %v240 = vmul.f32 0.5, %v239
        %v241 = vsub.f32 1.5, %v240
        %v242 = vmul.f32 %v237, %v241
        %vm243 = vweird.f32 %v236
        %vm244 = vweird.f32 %v237
        %vm245 = vmor %vm243, %vm244
        %v246 = vsel %vm245, %v237, %v242
        %s247 = vtos %v246
        %v248 = vstv %s247
        %v249 = vmul.f32 %v228, %v248
        %v250 = vstv %s230
        %v251 = vmul.f32 %v250, %v249
        %v252 = vsub.f32 %v229, %v251
        %254 = vset.pattern.permute.xlu0 0
        %255 = vperm.xlu0 %254, %v249
        %v256 = vpop.permute.xlu0 %255
        %v258 = vunpack.c.l.s4 839922192
        %v259 = vunpack.c.0.s8 %v258
        %v260 = vperm.slane %v256, %v259
        %v262 = vmul.f32 %v189, %v260
        %264 = vset.pattern.permute.xlu0 0
        %265 = vperm.xlu0 %264, %v252
        %v266 = vpop.permute.xlu0 %265
        %v268 = vunpack.c.l.s4 839922192
        %v269 = vunpack.c.0.s8 %v268
        %v270 = vperm.slane %v266, %v269
        %v272 = vadd.f32 %v262, %v270
        %273 = vst [vmem:[%s188] sm:$0xff] %v272
        %s274 = sand.u32 %s96, 1
        %s275 = scalar_lea.sflag [#allocation4], %s274
        %s276 = sand.u32 %s96, 1
        %s277 = smul.addr %s276, 8
        %s278 = scalar_lea.vmem [#allocation5], %s277
        // Predicated region
        $region37: #{tpu_custom_call.1} parent=31 // pred_check
          %p279 = pneg %p106
        $region38: #{tpu_custom_call.1} parent=31 // pred_check_branch
          %281 = sbr.rel (%p279) target = $region40
        $region39: #{tpu_custom_call.1} parent=31 // pred_region
          %283 = vsyncadd %s275, 0
          %s284 = smul.addr %s20, 2
          %s285 = smul.addr %s284, 4
          %s286 = scalar_lea.hbm %s3, %s285
          %s288 = sshll.u32 %s278, 4
          %s289 = int_to_ptr.vmem [resolvable:$true] %s288
          %s290 = sshll.u32 %s286, 4
          %s291 = int_to_ptr.hbm [resolvable:$true] %s290
          %293 = dma.vmem_to_hbm [thread:$0]  %s289, 128, %s291, %s275
        $region40: #{tpu_custom_call.1} parent=31 // pred_fallthru
          _
      $region32: #{tpu_custom_call.1} parent=5 // pred_fallthru
        _
      %p294 = scmp.le.s32.totalorder 2, %s15
      // Predicated region
      $region41: #{tpu_custom_call.1} parent=5 // pred_check
        %p295 = pneg %p294
      $region42: #{tpu_custom_call.1} parent=5 // pred_check_branch
        %297 = sbr.rel (%p295) target = $region44
      $region43: #{tpu_custom_call.1} parent=5 // pred_region
        %s298 = ssub.s32 %s15, 2
        // Predicated region
        $region45: #{tpu_custom_call.1} parent=43 // pred_check
          %p299 = pneg %p112
        $region46: #{tpu_custom_call.1} parent=43 // pred_check_branch
          %301 = sbr.rel (%p299) target = $region48
        $region47: #{tpu_custom_call.1} parent=43 // pred_region
          %s302 = sand.u32 %s97, 1
          %s303 = scalar_lea.sflag [#allocation4], %s302
          %s304 = sand.u32 %s97, 1
          %s305 = smul.addr %s304, 8
          %s306 = scalar_lea.vmem [#allocation5], %s305
          %308 = dma.done %s303, 128
        $region48: #{tpu_custom_call.1} parent=43 // pred_fallthru
          _
      $region44: #{tpu_custom_call.1} parent=5 // pred_fallthru
        _
    $region6: #{tpu_custom_call.1} parent=1 // loop_footer
      %s19 = sadd.s32 1, %s15
    $region7: #{tpu_custom_call.1} parent=1 // loop_footer_branch
      %14 = sbr.rel target = $region3
    $region8: #{tpu_custom_call.1} parent=1 // loop_exit
      _
    %309 = vsyncpa [#allocation3], 1
    %s310 = scalar_lea.sflag [#allocation3], 1
    %311 = vsyncpa %s310, 1
    %312 = vsyncpa [#allocation4], 1
    %s313 = scalar_lea.sflag [#allocation4], 1
    %314 = vsyncpa %s313, 1

</llo_original>
